<compile_context>
chip_gen: v5e
topology: v5e:2x2
jax: 0.10.0
libtpu: 0.0.40
codegen_flags: <defaults>
</compile_context>

<pallas_src>
import jax
import jax.numpy as jnp
from jax.experimental import pallas as pl
from jax.experimental.pallas import tpu as pltpu


def basic_block_kernel(x_ref, b1_ref, b2_ref, t1_ref, t2_ref, o_ref,
                       xp_ref, x1p_ref):
    """One image per grid step; W and C fused onto the lane axis.

    x_ref  : (1, H, W*C)        input image, channels fused into lanes
    b1_ref : (3, W*C, W*C)      conv1 banded weights (BN scale folded), kh-major
    b2_ref : (3, W*C, W*C)      conv2 banded weights (BN scale folded)
    t1_ref : (1, W*C)           conv1 folded shift (bias + BN), tiled over W
    t2_ref : (1, W*C)           conv2 folded shift
    o_ref  : (1, H, W*C)        output image
    xp_ref : VMEM (H+2, W*C)    input staged with one zero halo row top/bottom
    x1p_ref: VMEM (H+2, W*C)    conv1 activation staged with zero halo rows
    """
    H = o_ref.shape[1]
    WC = o_ref.shape[2]
    zero_row = jnp.zeros((1, WC), jnp.float32)

    # ---- stage input into row-padded VMEM scratch (zero halo rows) ----------
    xp_ref[0:1, :] = zero_row
    xp_ref[H + 1:H + 2, :] = zero_row
    xp_ref[1:H + 1, :] = x_ref[0].astype(jnp.float32)

    # ---- conv1 (+ folded BN scale) : 3 banded matmuls over row taps ---------
    acc1 = jnp.zeros((H, WC), jnp.float32)
    for kh in range(3):  # 3 taps, each a chunky K = W*C matmul
        acc1 = acc1 + jnp.dot(xp_ref[kh:kh + H, :], b1_ref[kh],
                              preferred_element_type=jnp.float32)
    x1 = jnp.maximum(acc1 + t1_ref[...], 0.0)  # bias/BN shift + ReLU (f32 VPU)

    # ---- stage conv1 output into second row-padded scratch ------------------
    x1p_ref[0:1, :] = zero_row
    x1p_ref[H + 1:H + 2, :] = zero_row
    x1p_ref[1:H + 1, :] = x1

    # ---- conv2 (+ folded BN scale) ------------------------------------------
    acc2 = jnp.zeros((H, WC), jnp.float32)
    for kh in range(3):
        acc2 = acc2 + jnp.dot(x1p_ref[kh:kh + H, :], b2_ref[kh],
                              preferred_element_type=jnp.float32)
    x2 = acc2 + t2_ref[...]

    # ---- residual add + ReLU -------------------------------------------------
    xin = xp_ref[1:H + 1, :]
    o_ref[0] = jnp.maximum(xin + x2, 0.0).astype(o_ref.dtype)


def _make_banded_weights(w_hwio, scale, W):
    """Build per-kh banded weight matrices of shape (3, W*C, W*C).

    B[kh][(w+kw-1)*C + ci, w*C + co] = w_hwio[kh, kw, ci, co] * scale[co]
    for 0 <= w+kw-1 < W (out-of-range columns == implicit zero padding).
    """
    C = w_hwio.shape[2]
    w_scaled = w_hwio * scale[None, None, None, :]
    blocks = []
    for kh in range(3):
        b = jnp.zeros((W * C, W * C), w_hwio.dtype)
        for kw in range(3):
            # shift[w', w] == 1 iff w' == w + kw - 1 (boundary clipping == pad).
            shift = jnp.eye(W, k=1 - kw, dtype=w_hwio.dtype)
            b = b + jnp.kron(shift, w_scaled[kh, kw])
        blocks.append(b)
    return jnp.stack(blocks, axis=0)


@jax.jit
def basic_block_forward(x_nchw, w1_hwio, b1, g1, be1, w2_hwio, b2, g2, be2):
    """PyTorch-equivalent forward (eval-mode BN).  x_nchw: (N, C, H, W)."""
    eps = 1e-5
    running_mean = 0.0
    running_var = 1.0

    N, C, H, W = x_nchw.shape
    WC = W * C

    # NCHW -> (N, H, W*C): channels-last, then fuse W and C onto the lane axis.
    x = jnp.transpose(x_nchw, (0, 2, 3, 1)).reshape(N, H, WC)

    # Fold BN (eval mode) + conv bias into per-channel scale/shift.
    s1 = g1 / jnp.sqrt(running_var + eps)
    t1 = be1 + s1 * (b1 - running_mean)
    s2 = g2 / jnp.sqrt(running_var + eps)
    t2 = be2 + s2 * (b2 - running_mean)

    # Banded weights with BN scale folded in; shift vectors tiled over W.
    B1 = _make_banded_weights(w1_hwio, s1, W)          # (3, WC, WC)
    B2 = _make_banded_weights(w2_hwio, s2, W)          # (3, WC, WC)
    t1v = jnp.tile(t1, W).reshape(1, WC)               # [w*C + co] -> t1[co]
    t2v = jnp.tile(t2, W).reshape(1, WC)

    out_fused = pl.pallas_call(
        basic_block_kernel,
        out_shape=jax.ShapeDtypeStruct((N, H, WC), x.dtype),
        grid_spec=pltpu.PrefetchScalarGridSpec(
            num_scalar_prefetch=0,
            grid=(N,),
            in_specs=[
                pl.BlockSpec((1, H, WC), lambda n: (n, 0, 0)),
                # Constant index_map -> fetched once across the grid.
                pl.BlockSpec((3, WC, WC), lambda n: (0, 0, 0)),
                pl.BlockSpec((3, WC, WC), lambda n: (0, 0, 0)),
                pl.BlockSpec((1, WC), lambda n: (0, 0)),
                pl.BlockSpec((1, WC), lambda n: (0, 0)),
            ],
            out_specs=pl.BlockSpec((1, H, WC), lambda n: (n, 0, 0)),
            scratch_shapes=[
                pltpu.VMEM((H + 2, WC), jnp.float32),   # padded input
                pltpu.VMEM((H + 2, WC), jnp.float32),   # padded conv1 output
            ],
        ),
        compiler_params=pltpu.CompilerParams(
            dimension_semantics=("parallel",)),
    )(x, B1, B2, t1v, t2v)

    # (N, H, W*C) -> NCHW.
    return jnp.transpose(out_fused.reshape(N, H, W, C), (0, 3, 1, 2))


def reference_forward(x_nchw, w1_hwio, b1, g1, be1, w2_hwio, b2, g2, be2):
    """Pure-JAX reference of the PyTorch module (eval-mode BN)."""
    eps = 1e-5
    x = jnp.transpose(x_nchw, (0, 2, 3, 1))
    dn = ('NHWC', 'HWIO', 'NHWC')
    y = jax.lax.conv_general_dilated(
        x, w1_hwio, (1, 1), 'SAME', dimension_numbers=dn,
        precision=jax.lax.Precision.HIGHEST) + b1
    y = g1 * (y - 0.0) / jnp.sqrt(1.0 + eps) + be1
    y = jnp.maximum(y, 0.0)
    z = jax.lax.conv_general_dilated(
        y, w2_hwio, (1, 1), 'SAME', dimension_numbers=dn,
        precision=jax.lax.Precision.HIGHEST) + b2
    z = g2 * (z - 0.0) / jnp.sqrt(1.0 + eps) + be2
    out = jnp.maximum(x + z, 0.0)
    return jnp.transpose(out, (0, 3, 1, 2))


if __name__ == "__main__":
    N, C, H, W = 2, 4, 16, 16  # filters = 4

    key = jax.random.PRNGKey(0)
    k = jax.random.split(key, 8)
    x = jax.random.normal(k[0], (N, C, H, W), jnp.float32)

    fan = C * 9
    w1 = jax.random.normal(k[1], (3, 3, C, C), jnp.float32) / jnp.sqrt(fan)
    b1 = 0.1 * jax.random.normal(k[2], (C,), jnp.float32)
    w2 = jax.random.normal(k[3], (3, 3, C, C), jnp.float32) / jnp.sqrt(fan)
    b2 = 0.1 * jax.random.normal(k[4], (C,), jnp.float32)
    g1 = 1.0 + 0.1 * jax.random.normal(k[5], (C,), jnp.float32)
    be1 = 0.1 * jax.random.normal(k[6], (C,), jnp.float32)
    g2 = 1.0 + 0.05 * jax.random.normal(k[7], (C,), jnp.float32)
    be2 = jnp.zeros((C,), jnp.float32)

    out = basic_block_forward(x, w1, b1, g1, be1, w2, b2, g2, be2)
    out = jax.block_until_ready(out)

    ref = reference_forward(x, w1, b1, g1, be1, w2, b2, g2, be2)
    assert out.shape == (N, C, H, W), out.shape
    err = float(jnp.max(jnp.abs(out - ref)))
    assert err < 1e-4, err

    print("KERNEL_OK")
</pallas_src>

<mosaic_0001>
module attributes {stable_mosaic.version = 11 : i64} {
  func.func @basic_block_kernel(%arg0: i32, %arg1: memref<1x16x64xf32, #tpu.memory_space<vmem>>, %arg2: memref<3x64x64xf32, #tpu.memory_space<vmem>>, %arg3: memref<3x64x64xf32, #tpu.memory_space<vmem>>, %arg4: memref<1x64xf32, #tpu.memory_space<vmem>>, %arg5: memref<1x64xf32, #tpu.memory_space<vmem>>, %arg6: memref<1x16x64xf32, #tpu.memory_space<vmem>>, %arg7: memref<18x64xf32, #tpu.memory_space<vmem>>, %arg8: memref<18x64xf32, #tpu.memory_space<vmem>>) attributes {dimension_semantics = [#tpu.dimension_semantics<parallel>], iteration_bounds = array<i64: 2>, scalar_prefetch = 0 : i64, scratch_operands = 2 : i64, tpu.core_type = #tpu.core_type<tc>, window_params = [{transform_indices = @transform_0, window_bounds = array<i64: 1, 16, 64>}, {pipeline_mode = #tpu.pipeline_mode<synchronous>, transform_indices = @transform_1, window_bounds = array<i64: 3, 64, 64>}, {pipeline_mode = #tpu.pipeline_mode<synchronous>, transform_indices = @transform_2, window_bounds = array<i64: 3, 64, 64>}, {pipeline_mode = #tpu.pipeline_mode<synchronous>, transform_indices = @transform_3, window_bounds = array<i64: 1, 64>}, {pipeline_mode = #tpu.pipeline_mode<synchronous>, transform_indices = @transform_4, window_bounds = array<i64: 1, 64>}, {transform_indices = @transform_5, window_bounds = array<i64: 1, 16, 64>}]} {
    %cst = arith.constant 0.000000e+00 : f32
    %0 = vector.broadcast %cst : f32 to vector<1x64xf32>
    %c0 = arith.constant 0 : index
    %c0_0 = arith.constant 0 : index
    %1 = vector.load %arg7[%c0, %c0_0] : memref<18x64xf32, #tpu.memory_space<vmem>>, vector<1x64xf32>
    tpu.vector_store %arg7[%c0, %c0_0], %0 {strides = array<i32>} : memref<18x64xf32, #tpu.memory_space<vmem>>, vector<1x64xf32>,
    %c17 = arith.constant 17 : index
    %c0_1 = arith.constant 0 : index
    %2 = vector.load %arg7[%c17, %c0_1] : memref<18x64xf32, #tpu.memory_space<vmem>>, vector<1x64xf32>
    tpu.vector_store %arg7[%c17, %c0_1], %0 {strides = array<i32>} : memref<18x64xf32, #tpu.memory_space<vmem>>, vector<1x64xf32>,
    %c0_2 = arith.constant 0 : index
    %c0_3 = arith.constant 0 : index
    %c0_4 = arith.constant 0 : index
    %3 = vector.load %arg1[%c0_2, %c0_3, %c0_4] : memref<1x16x64xf32, #tpu.memory_space<vmem>>, vector<1x16x64xf32>
    %4 = vector.shape_cast %3 : vector<1x16x64xf32> to vector<16x64xf32>
    %c1 = arith.constant 1 : index
    %c0_5 = arith.constant 0 : index
    %5 = vector.load %arg7[%c1, %c0_5] : memref<18x64xf32, #tpu.memory_space<vmem>>, vector<16x64xf32>
    tpu.vector_store %arg7[%c1, %c0_5], %4 {strides = array<i32>} : memref<18x64xf32, #tpu.memory_space<vmem>>, vector<16x64xf32>,
    %cst_6 = arith.constant 0.000000e+00 : f32
    %6 = vector.broadcast %cst_6 : f32 to vector<16x64xf32>
    %c0_7 = arith.constant 0 : index
    %c0_8 = arith.constant 0 : index
    %7 = vector.load %arg7[%c0_7, %c0_8] : memref<18x64xf32, #tpu.memory_space<vmem>>, vector<16x64xf32>
    %c0_9 = arith.constant 0 : index
    %c0_10 = arith.constant 0 : index
    %c0_11 = arith.constant 0 : index
    %8 = vector.load %arg2[%c0_9, %c0_10, %c0_11] : memref<3x64x64xf32, #tpu.memory_space<vmem>>, vector<1x64x64xf32>
    %9 = vector.shape_cast %8 : vector<1x64x64xf32> to vector<64x64xf32>
    %cst_12 = arith.constant dense<0.000000e+00> : vector<16x64xf32>
    %10 = tpu.matmul %7, %9, %cst_12 {dimension_numbers = #tpu.dot_dimension_numbers<[1], [0], [0], [1], [0, 0, 1, 1], [], []>} : vector<16x64xf32>, vector<64x64xf32>, vector<16x64xf32> -> vector<16x64xf32>
    %11 = arith.addf %6, %10 : vector<16x64xf32>
    %c1_13 = arith.constant 1 : index
    %c0_14 = arith.constant 0 : index
    %12 = vector.load %arg7[%c1_13, %c0_14] : memref<18x64xf32, #tpu.memory_space<vmem>>, vector<16x64xf32>
    %c1_15 = arith.constant 1 : index
    %c0_16 = arith.constant 0 : index
    %c0_17 = arith.constant 0 : index
    %13 = vector.load %arg2[%c1_15, %c0_16, %c0_17] : memref<3x64x64xf32, #tpu.memory_space<vmem>>, vector<1x64x64xf32>
    %14 = vector.shape_cast %13 : vector<1x64x64xf32> to vector<64x64xf32>
    %cst_18 = arith.constant dense<0.000000e+00> : vector<16x64xf32>
    %15 = tpu.matmul %12, %14, %cst_18 {dimension_numbers = #tpu.dot_dimension_numbers<[1], [0], [0], [1], [0, 0, 1, 1], [], []>} : vector<16x64xf32>, vector<64x64xf32>, vector<16x64xf32> -> vector<16x64xf32>
    %16 = arith.addf %11, %15 : vector<16x64xf32>
    %c2 = arith.constant 2 : index
    %c0_19 = arith.constant 0 : index
    %17 = vector.load %arg7[%c2, %c0_19] : memref<18x64xf32, #tpu.memory_space<vmem>>, vector<16x64xf32>
    %c2_20 = arith.constant 2 : index
    %c0_21 = arith.constant 0 : index
    %c0_22 = arith.constant 0 : index
    %18 = vector.load %arg2[%c2_20, %c0_21, %c0_22] : memref<3x64x64xf32, #tpu.memory_space<vmem>>, vector<1x64x64xf32>
    %19 = vector.shape_cast %18 : vector<1x64x64xf32> to vector<64x64xf32>
    %cst_23 = arith.constant dense<0.000000e+00> : vector<16x64xf32>
    %20 = tpu.matmul %17, %19, %cst_23 {dimension_numbers = #tpu.dot_dimension_numbers<[1], [0], [0], [1], [0, 0, 1, 1], [], []>} : vector<16x64xf32>, vector<64x64xf32>, vector<16x64xf32> -> vector<16x64xf32>
    %21 = arith.addf %16, %20 : vector<16x64xf32>
    %c0_24 = arith.constant 0 : index
    %c0_25 = arith.constant 0 : index
    %22 = vector.load %arg4[%c0_24, %c0_25] : memref<1x64xf32, #tpu.memory_space<vmem>>, vector<1x64xf32>
    %23 = vector.broadcast %22 : vector<1x64xf32> to vector<16x64xf32>
    %24 = arith.addf %21, %23 : vector<16x64xf32>
    %cst_26 = arith.constant 0.000000e+00 : f32
    %25 = vector.broadcast %cst_26 : f32 to vector<16x64xf32>
    %26 = arith.maximumf %24, %25 : vector<16x64xf32>
    %c0_27 = arith.constant 0 : index
    %c0_28 = arith.constant 0 : index
    %27 = vector.load %arg8[%c0_27, %c0_28] : memref<18x64xf32, #tpu.memory_space<vmem>>, vector<1x64xf32>
    tpu.vector_store %arg8[%c0_27, %c0_28], %0 {strides = array<i32>} : memref<18x64xf32, #tpu.memory_space<vmem>>, vector<1x64xf32>,
    %c17_29 = arith.constant 17 : index
    %c0_30 = arith.constant 0 : index
    %28 = vector.load %arg8[%c17_29, %c0_30] : memref<18x64xf32, #tpu.memory_space<vmem>>, vector<1x64xf32>
    tpu.vector_store %arg8[%c17_29, %c0_30], %0 {strides = array<i32>} : memref<18x64xf32, #tpu.memory_space<vmem>>, vector<1x64xf32>,
    %c1_31 = arith.constant 1 : index
    %c0_32 = arith.constant 0 : index
    %29 = vector.load %arg8[%c1_31, %c0_32] : memref<18x64xf32, #tpu.memory_space<vmem>>, vector<16x64xf32>
    tpu.vector_store %arg8[%c1_31, %c0_32], %26 {strides = array<i32>} : memref<18x64xf32, #tpu.memory_space<vmem>>, vector<16x64xf32>,
    %cst_33 = arith.constant 0.000000e+00 : f32
    %30 = vector.broadcast %cst_33 : f32 to vector<16x64xf32>
    %c0_34 = arith.constant 0 : index
    %c0_35 = arith.constant 0 : index
    %31 = vector.load %arg8[%c0_34, %c0_35] : memref<18x64xf32, #tpu.memory_space<vmem>>, vector<16x64xf32>
    %c0_36 = arith.constant 0 : index
    %c0_37 = arith.constant 0 : index
    %c0_38 = arith.constant 0 : index
    %32 = vector.load %arg3[%c0_36, %c0_37, %c0_38] : memref<3x64x64xf32, #tpu.memory_space<vmem>>, vector<1x64x64xf32>
    %33 = vector.shape_cast %32 : vector<1x64x64xf32> to vector<64x64xf32>
    %cst_39 = arith.constant dense<0.000000e+00> : vector<16x64xf32>
    %34 = tpu.matmul %31, %33, %cst_39 {dimension_numbers = #tpu.dot_dimension_numbers<[1], [0], [0], [1], [0, 0, 1, 1], [], []>} : vector<16x64xf32>, vector<64x64xf32>, vector<16x64xf32> -> vector<16x64xf32>
    %35 = arith.addf %30, %34 : vector<16x64xf32>
    %c1_40 = arith.constant 1 : index
    %c0_41 = arith.constant 0 : index
    %36 = vector.load %arg8[%c1_40, %c0_41] : memref<18x64xf32, #tpu.memory_space<vmem>>, vector<16x64xf32>
    %c1_42 = arith.constant 1 : index
    %c0_43 = arith.constant 0 : index
    %c0_44 = arith.constant 0 : index
    %37 = vector.load %arg3[%c1_42, %c0_43, %c0_44] : memref<3x64x64xf32, #tpu.memory_space<vmem>>, vector<1x64x64xf32>
    %38 = vector.shape_cast %37 : vector<1x64x64xf32> to vector<64x64xf32>
    %cst_45 = arith.constant dense<0.000000e+00> : vector<16x64xf32>
    %39 = tpu.matmul %36, %38, %cst_45 {dimension_numbers = #tpu.dot_dimension_numbers<[1], [0], [0], [1], [0, 0, 1, 1], [], []>} : vector<16x64xf32>, vector<64x64xf32>, vector<16x64xf32> -> vector<16x64xf32>
    %40 = arith.addf %35, %39 : vector<16x64xf32>
    %c2_46 = arith.constant 2 : index
    %c0_47 = arith.constant 0 : index
    %41 = vector.load %arg8[%c2_46, %c0_47] : memref<18x64xf32, #tpu.memory_space<vmem>>, vector<16x64xf32>
    %c2_48 = arith.constant 2 : index
    %c0_49 = arith.constant 0 : index
    %c0_50 = arith.constant 0 : index
    %42 = vector.load %arg3[%c2_48, %c0_49, %c0_50] : memref<3x64x64xf32, #tpu.memory_space<vmem>>, vector<1x64x64xf32>
    %43 = vector.shape_cast %42 : vector<1x64x64xf32> to vector<64x64xf32>
    %cst_51 = arith.constant dense<0.000000e+00> : vector<16x64xf32>
    %44 = tpu.matmul %41, %43, %cst_51 {dimension_numbers = #tpu.dot_dimension_numbers<[1], [0], [0], [1], [0, 0, 1, 1], [], []>} : vector<16x64xf32>, vector<64x64xf32>, vector<16x64xf32> -> vector<16x64xf32>
    %45 = arith.addf %40, %44 : vector<16x64xf32>
    %c0_52 = arith.constant 0 : index
    %c0_53 = arith.constant 0 : index
    %46 = vector.load %arg5[%c0_52, %c0_53] : memref<1x64xf32, #tpu.memory_space<vmem>>, vector<1x64xf32>
    %47 = vector.broadcast %46 : vector<1x64xf32> to vector<16x64xf32>
    %48 = arith.addf %45, %47 : vector<16x64xf32>
    %c1_54 = arith.constant 1 : index
    %c0_55 = arith.constant 0 : index
    %49 = vector.load %arg7[%c1_54, %c0_55] : memref<18x64xf32, #tpu.memory_space<vmem>>, vector<16x64xf32>
    %50 = arith.addf %49, %48 : vector<16x64xf32>
    %cst_56 = arith.constant 0.000000e+00 : f32
    %51 = vector.broadcast %cst_56 : f32 to vector<16x64xf32>
    %52 = arith.maximumf %50, %51 : vector<16x64xf32>
    %c0_57 = arith.constant 0 : index
    %c0_58 = arith.constant 0 : index
    %c0_59 = arith.constant 0 : index
    %53 = vector.load %arg6[%c0_57, %c0_58, %c0_59] : memref<1x16x64xf32, #tpu.memory_space<vmem>>, vector<1x16x64xf32>
    %54 = vector.shape_cast %53 : vector<1x16x64xf32> to vector<16x64xf32>
    %55 = vector.shape_cast %52 : vector<16x64xf32> to vector<1x16x64xf32>
    tpu.vector_store %arg6[%c0_57, %c0_58, %c0_59], %55 {strides = array<i32>} : memref<1x16x64xf32, #tpu.memory_space<vmem>>, vector<1x16x64xf32>,
    return
  }
  func.func @transform_0(%arg0: i32) -> (i32, i32, i32) {
    %c0_i32 = arith.constant 0 : i32
    %c0_i32_0 = arith.constant 0 : i32
    %c0_i32_1 = arith.constant 0 : i32
    return %arg0, %c0_i32, %c0_i32_0 : i32, i32, i32
  }
  func.func @transform_1(%arg0: i32) -> (i32, i32, i32) {
    %c0_i32 = arith.constant 0 : i32
    %c0_i32_0 = arith.constant 0 : i32
    %c0_i32_1 = arith.constant 0 : i32
    %c0_i32_2 = arith.constant 0 : i32
    return %c0_i32, %c0_i32_0, %c0_i32_1 : i32, i32, i32
  }
  func.func @transform_2(%arg0: i32) -> (i32, i32, i32) {
    %c0_i32 = arith.constant 0 : i32
    %c0_i32_0 = arith.constant 0 : i32
    %c0_i32_1 = arith.constant 0 : i32
    %c0_i32_2 = arith.constant 0 : i32
    return %c0_i32, %c0_i32_0, %c0_i32_1 : i32, i32, i32
  }
  func.func @transform_3(%arg0: i32) -> (i32, i32) {
    %c0_i32 = arith.constant 0 : i32
    %c0_i32_0 = arith.constant 0 : i32
    %c0_i32_1 = arith.constant 0 : i32
    return %c0_i32, %c0_i32_0 : i32, i32
  }
  func.func @transform_4(%arg0: i32) -> (i32, i32) {
    %c0_i32 = arith.constant 0 : i32
    %c0_i32_0 = arith.constant 0 : i32
    %c0_i32_1 = arith.constant 0 : i32
    return %c0_i32, %c0_i32_0 : i32, i32
  }
  func.func @transform_5(%arg0: i32) -> (i32, i32, i32) {
    %c0_i32 = arith.constant 0 : i32
    %c0_i32_0 = arith.constant 0 : i32
    %c0_i32_1 = arith.constant 0 : i32
    return %arg0, %c0_i32, %c0_i32_0 : i32, i32, i32
  }
}

</mosaic_0001>

<llo_original>
// kernel: tile.13
$region0: #{tile.13}
  #allocation0 [shape = 's32[1]{0}', space=sflag, size = 0x4, scoped, tag = 'scoped memory for tile.13']
  %s0 = inlined_call_operand.vmem [shape: f32[4], index: 0, kind: input, shape index: {}]
  %s1 = inlined_call_operand.vmem [shape: f32[16,4], index: 1, kind: output, shape index: {}]
  // Predicated region
  $region2: #{tile.13} parent=0 // pred_check
    _
  $region3: #{tile.13} parent=0 // pred_check_branch
    %3 = sbr.rel (0) target = $region5
  $region4: #{tile.13} parent=0 // pred_region
    _
  $region5: #{tile.13} parent=0 // pred_fallthru
    _
  %v4 = vld [vmem:[%s0] ss:$0 sm:$0xff]
  %5 = vst [vmem:[%s1] sm:$0xff] %v4
  %s6 = scalar_lea.vmem %s1, 8
  %7 = vst [vmem:[%s6] sm:$0xff] %v4

// kernel: tile.14
$region0: #{tile.14}
  %s0 = inlined_call_operand.vmem [shape: f32[16,4], index: 0, kind: input, shape index: {}]
  %s1 = inlined_call_operand.vmem [shape: f32[1,64], index: 1, kind: output, shape index: {}]
  $region1: #{tile.14} parent=0
    #allocation0 [shape = 'u8[4096]{0}', space=vmem, size = 0x1000, scoped, tag = 'scoped mem for output reshape']
    %v2 = vld [vmem:[%s0] sm:$0x1]
    %vm3 = vcmask 31744
    %4 = vst.msk [vmem:[#allocation0] sm:$0x1] %vm3, %v2
    %s5 = scalar_lea.vmem %s0, 15
    %v6 = vld [vmem:[%s5] sm:$0x1]
    %7 = vrot.lane.b32.xlu0 %v6, 60
    %v8 = vpop.permute.xlu0 %7
    %vm9 = vcmask 523744
    %10 = vst.msk [vmem:[#allocation0] sm:$0x1] %vm9, %v8
    %s11 = scalar_lea.vmem %s0, 14
    %v12 = vld [vmem:[%s11] sm:$0x1]
    %13 = vrot.lane.b32.xlu0 %v12, 56
    %v14 = vpop.permute.xlu0 %13
    %vm15 = vcmask 490944
    %16 = vst.msk [vmem:[#allocation0] sm:$0x1] %vm15, %v14
    %s17 = scalar_lea.vmem %s0, 13
    %v18 = vld [vmem:[%s17] sm:$0x1]
    %19 = vrot.lane.b32.xlu0 %v18, 52
    %v20 = vpop.permute.xlu0 %19
    %vm21 = vcmask 458144
    %22 = vst.msk [vmem:[#allocation0] sm:$0x1] %vm21, %v20
    %s23 = scalar_lea.vmem %s0, 12
    %v24 = vld [vmem:[%s23] sm:$0x1]
    %25 = vrot.lane.b32.xlu0 %v24, 48
    %v26 = vpop.permute.xlu0 %25
    %vm27 = vcmask 425344
    %28 = vst.msk [vmem:[#allocation0] sm:$0x1] %vm27, %v26
    %s29 = scalar_lea.vmem %s0, 11
    %v30 = vld [vmem:[%s29] sm:$0x1]
    %31 = vrot.lane.b32.xlu0 %v30, 44
    %v32 = vpop.permute.xlu0 %31
    %vm33 = vcmask 392544
    %34 = vst.msk [vmem:[#allocation0] sm:$0x1] %vm33, %v32
    %s35 = scalar_lea.vmem %s0, 10
    %v36 = vld [vmem:[%s35] sm:$0x1]
    %37 = vrot.lane.b32.xlu0 %v36, 40
    %v38 = vpop.permute.xlu0 %37
    %vm39 = vcmask 359744
    %40 = vst.msk [vmem:[#allocation0] sm:$0x1] %vm39, %v38
    %s41 = scalar_lea.vmem %s0, 9
    %v42 = vld [vmem:[%s41] sm:$0x1]
    %43 = vrot.lane.b32.xlu0 %v42, 36
    %v44 = vpop.permute.xlu0 %43
    %vm45 = vcmask 326944
    %46 = vst.msk [vmem:[#allocation0] sm:$0x1] %vm45, %v44
    %s47 = scalar_lea.vmem %s0, 8
    %v48 = vld [vmem:[%s47] sm:$0x1]
    %49 = vrot.lane.b32.xlu0 %v48, 32
    %v50 = vpop.permute.xlu0 %49
    %vm51 = vcmask 294144
    %52 = vst.msk [vmem:[#allocation0] sm:$0x1] %vm51, %v50
    %s53 = scalar_lea.vmem %s0, 7
    %v54 = vld [vmem:[%s53] sm:$0x1]
    %55 = vrot.lane.b32.xlu0 %v54, 28
    %v56 = vpop.permute.xlu0 %55
    %vm57 = vcmask 261344
    %58 = vst.msk [vmem:[#allocation0] sm:$0x1] %vm57, %v56
    %s59 = scalar_lea.vmem %s0, 6
    %v60 = vld [vmem:[%s59] sm:$0x1]
    %61 = vrot.lane.b32.xlu0 %v60, 24
    %v62 = vpop.permute.xlu0 %61
    %vm63 = vcmask 228544
    %64 = vst.msk [vmem:[#allocation0] sm:$0x1] %vm63, %v62
    %s65 = scalar_lea.vmem %s0, 5
    %v66 = vld [vmem:[%s65] sm:$0x1]
    %67 = vrot.lane.b32.xlu0 %v66, 20
    %v68 = vpop.permute.xlu0 %67
    %vm69 = vcmask 195744
    %70 = vst.msk [vmem:[#allocation0] sm:$0x1] %vm69, %v68
    %s71 = scalar_lea.vmem %s0, 4
    %v72 = vld [vmem:[%s71] sm:$0x1]
    %73 = vrot.lane.b32.xlu0 %v72, 16
    %v74 = vpop.permute.xlu0 %73
    %vm75 = vcmask 162944
    %76 = vst.msk [vmem:[#allocation0] sm:$0x1] %vm75, %v74
    %s77 = scalar_lea.vmem %s0, 3
    %v78 = vld [vmem:[%s77] sm:$0x1]
    %79 = vrot.lane.b32.xlu0 %v78, 12
    %v80 = vpop.permute.xlu0 %79
    %vm81 = vcmask 130144
    %82 = vst.msk [vmem:[#allocation0] sm:$0x1] %vm81, %v80
    %s83 = scalar_lea.vmem %s0, 2
    %v84 = vld [vmem:[%s83] sm:$0x1]
    %85 = vrot.lane.b32.xlu0 %v84, 8
    %v86 = vpop.permute.xlu0 %85
    %vm87 = vcmask 97344
    %88 = vst.msk [vmem:[#allocation0] sm:$0x1] %vm87, %v86
    %s89 = scalar_lea.vmem %s0, 1
    %v90 = vld [vmem:[%s89] sm:$0x1]
    %91 = vrot.lane.b32.xlu0 %v90, 4
    %v92 = vpop.permute.xlu0 %91
    %vm93 = vcmask 64544
    %94 = vst.msk [vmem:[#allocation0] sm:$0x1] %vm93, %v92
    %s96 = ssub.s32 2, 1
    %v97 = vld [vmem:[#allocation0] sm:%s96]
    %s99 = ssub.s32 2, 1
    %100 = vst [vmem:[%s1] sm:%s99] %v97

// kernel: basic_block_forward.1
$region0: #{basic_block_forward.1}
  #allocation0 [shape = 'u32[]', space=smem, size = 0x4, offset = 0x4, fixed_abs, tag = 'smem constant byte address 0x4 - core index']
  #allocation1 [shape = 'u32[72,128]{1,0:T(1,128)}', space=vmem, size = 0x9000, scoped, tag = 'internal scratch']
  #allocation2 [shape = 'f32[18,64]{1,0:T(8,128)}', space=vmem, size = 0x3000, scoped, tag = 'scratch operand']
  #allocation3 [shape = 'f32[18,64]{1,0:T(8,128)}', space=vmem, size = 0x3000, scoped, tag = 'scratch operand']
  %s0 = inlined_call_operand.vmem [shape: f32[2,16,64], index: 0, kind: input, shape index: {}]
  %s1 = inlined_call_operand.vmem [shape: f32[3,64,64], index: 1, kind: input, shape index: {}]
  %s2 = inlined_call_operand.vmem [shape: f32[3,64,64], index: 2, kind: input, shape index: {}]
  %s3 = inlined_call_operand.vmem [shape: f32[1,64], index: 3, kind: input, shape index: {}]
  %s4 = inlined_call_operand.vmem [shape: f32[1,64], index: 4, kind: input, shape index: {}]
  %s5 = inlined_call_operand.vmem [shape: f32[2,16,64], index: 5, kind: output, shape index: {}]
  %s6 = sld [smem:[#allocation0]]
  $region53: #{basic_block_forward.1} parent=0
    _
  %s8 = ssub.s32 1, %s6
  %s9 = scalar_select 0, %s8, %s6
  loop: start=0, step=1, limit=4
  $region2: #{basic_block_forward.1} parent=0 // loop_pre_header
    _
  $region3: #{basic_block_forward.1} parent=0 // loop_header
    %s11 = sphi 0, %s15
    %p12 = scmp.ge.s32.totalorder %s11, 4
    %s21 = sphi 0, %s23
    %s24 = sphi 0, %s21
    %s25 = sphi 0, %s24
    %s41 = sphi 0, %s25
    %s45 = sphi 0, %s45
    %s47 = sphi 0, %s45
    %s48 = sphi 0, %s47
    %s62 = sphi 0, %s48
    %s66 = sphi 0, %s66
    %s68 = sphi 0, %s66
    %s69 = sphi 0, %s68
    %s83 = sphi 0, %s69
    %s87 = sphi 0, %s87
    %s89 = sphi 0, %s87
    %s90 = sphi 0, %s89
    %s104 = sphi 0, %s90
    %s108 = sphi 0, %s108
    %s110 = sphi 0, %s108
    %s111 = sphi 0, %s110
    %s125 = sphi 0, %s111
    %s131 = sphi 0, %s133
    %s134 = sphi 0, %s131
    %s135 = sphi 0, %s134
    %s151 = sphi 0, %s135
  $region4: #{basic_block_forward.1} parent=0 // loop_header_branch
    %14 = sbr.rel (%p12) target = $region8
  $region5: #{basic_block_forward.1} parent=0 // loop_body
    %s16 = ssub.s32 %s11, 1
    %s17 = ssub.s32 %s11, 2
    %s18 = sadd.s32 %s11, 1
    %s19 = ssub.s32 %s11, %s18
    %p20 = scmp.eq.s32.totalorder %s19, 0
    %s22 = sadd.s32 %s21, 1
    %s23 = scalar_select %p20, %s21, %s22
    %p26 = pneg %p20
    %p27 = scmp.eq.s32.totalorder %s11, 1
    %p28 = por %p26, %p27
    %p29 = scmp.ne.s32.totalorder %s21, %s24
    %p30 = scmp.eq.s32.totalorder %s11, 0
    %p31 = por %p29, %p30
    %p32 = scmp.ne.s32.totalorder %s21, %s24
    %p33 = scmp.eq.s32.totalorder %s16, 1
    %p34 = por %p32, %p33
    %p35 = scmp.ne.s32.totalorder %s24, %s25
    %p36 = scmp.eq.s32.totalorder %s16, 0
    %p37 = por %p35, %p36
    %p38 = scmp.ne.s32.totalorder %s24, %s25
    %p39 = scmp.eq.s32.totalorder %s17, 1
    %p40 = por %p38, %p39
    %p42 = scmp.ne.s32.totalorder %s25, %s41
    %p43 = scmp.eq.s32.totalorder %s17, 0
    %p44 = por %p42, %p43
    %s46 = sadd.s32 %s45, 1
    %p49 = scmp.eq.s32.totalorder %s11, 1
    %p50 = scmp.ne.s32.totalorder %s45, %s47
    %p51 = scmp.eq.s32.totalorder %s11, 0
    %p52 = por %p50, %p51
    %p53 = scmp.ne.s32.totalorder %s45, %s47
    %p54 = scmp.eq.s32.totalorder %s16, 1
    %p55 = por %p53, %p54
    %p56 = scmp.ne.s32.totalorder %s47, %s48
    %p57 = scmp.eq.s32.totalorder %s16, 0
    %p58 = por %p56, %p57
    %p59 = scmp.ne.s32.totalorder %s47, %s48
    %p60 = scmp.eq.s32.totalorder %s17, 1
    %p61 = por %p59, %p60
    %p63 = scmp.ne.s32.totalorder %s48, %s62
    %p64 = scmp.eq.s32.totalorder %s17, 0
    %p65 = por %p63, %p64
    %s67 = sadd.s32 %s66, 1
    %p70 = scmp.eq.s32.totalorder %s11, 1
    %p71 = scmp.ne.s32.totalorder %s66, %s68
    %p72 = scmp.eq.s32.totalorder %s11, 0
    %p73 = por %p71, %p72
    %p74 = scmp.ne.s32.totalorder %s66, %s68
    %p75 = scmp.eq.s32.totalorder %s16, 1
    %p76 = por %p74, %p75
    %p77 = scmp.ne.s32.totalorder %s68, %s69
    %p78 = scmp.eq.s32.totalorder %s16, 0
    %p79 = por %p77, %p78
    %p80 = scmp.ne.s32.totalorder %s68, %s69
    %p81 = scmp.eq.s32.totalorder %s17, 1
    %p82 = por %p80, %p81
    %p84 = scmp.ne.s32.totalorder %s69, %s83
    %p85 = scmp.eq.s32.totalorder %s17, 0
    %p86 = por %p84, %p85
    %s88 = sadd.s32 %s87, 1
    %p91 = scmp.eq.s32.totalorder %s11, 1
    %p92 = scmp.ne.s32.totalorder %s87, %s89
    %p93 = scmp.eq.s32.totalorder %s11, 0
    %p94 = por %p92, %p93
    %p95 = scmp.ne.s32.totalorder %s87, %s89
    %p96 = scmp.eq.s32.totalorder %s16, 1
    %p97 = por %p95, %p96
    %p98 = scmp.ne.s32.totalorder %s89, %s90
    %p99 = scmp.eq.s32.totalorder %s16, 0
    %p100 = por %p98, %p99
    %p101 = scmp.ne.s32.totalorder %s89, %s90
    %p102 = scmp.eq.s32.totalorder %s17, 1
    %p103 = por %p101, %p102
    %p105 = scmp.ne.s32.totalorder %s90, %s104
    %p106 = scmp.eq.s32.totalorder %s17, 0
    %p107 = por %p105, %p106
    %s109 = sadd.s32 %s108, 1
    %p112 = scmp.eq.s32.totalorder %s11, 1
    %p113 = scmp.ne.s32.totalorder %s108, %s110
    %p114 = scmp.eq.s32.totalorder %s11, 0
    %p115 = por %p113, %p114
    %p116 = scmp.ne.s32.totalorder %s108, %s110
    %p117 = scmp.eq.s32.totalorder %s16, 1
    %p118 = por %p116, %p117
    %p119 = scmp.ne.s32.totalorder %s110, %s111
    %p120 = scmp.eq.s32.totalorder %s16, 0
    %p121 = por %p119, %p120
    %p122 = scmp.ne.s32.totalorder %s110, %s111
    %p123 = scmp.eq.s32.totalorder %s17, 1
    %p124 = por %p122, %p123
    %p126 = scmp.ne.s32.totalorder %s111, %s125
    %p127 = scmp.eq.s32.totalorder %s17, 0
    %p128 = por %p126, %p127
    %s129 = ssub.s32 %s11, %s18
    %p130 = scmp.eq.s32.totalorder %s129, 0
    %s132 = sadd.s32 %s131, 1
    %s133 = scalar_select %p130, %s131, %s132
    %p136 = pneg %p130
    %p137 = scmp.eq.s32.totalorder %s11, 1
    %p138 = por %p136, %p137
    %p139 = scmp.ne.s32.totalorder %s131, %s134
    %p140 = scmp.eq.s32.totalorder %s11, 0
    %p141 = por %p139, %p140
    %p142 = scmp.ne.s32.totalorder %s131, %s134
    %p143 = scmp.eq.s32.totalorder %s16, 1
    %p144 = por %p142, %p143
    %p145 = scmp.ne.s32.totalorder %s134, %s135
    %p146 = scmp.eq.s32.totalorder %s16, 0
    %p147 = por %p145, %p146
    %p148 = scmp.ne.s32.totalorder %s134, %s135
    %p149 = scmp.eq.s32.totalorder %s17, 1
    %p150 = por %p148, %p149
    %p152 = scmp.ne.s32.totalorder %s135, %s151
    %p153 = scmp.eq.s32.totalorder %s17, 0
    %p154 = por %p152, %p153
    %p155 = scmp.le.s32.totalorder 1, %s11
    %p156 = scmp.lt.s32.totalorder %s11, 3
    %p157 = pnand %p155, %p156
    %p158 = pneg %p157
    // Predicated region
    $region9: #{basic_block_forward.1} parent=5 // pred_check
      _
    $region10: #{basic_block_forward.1} parent=5 // pred_check_branch
      %160 = sbr.rel (%p157) target = $region12
    $region11: #{basic_block_forward.1} parent=5 // pred_region
      %s161 = ssub.s32 %s11, 1
      // Predicated region
      $region13: #{basic_block_forward.1} parent=11 // pred_check
        %p162 = pneg %p58
      $region14: #{basic_block_forward.1} parent=11 // pred_check_branch
        %164 = sbr.rel (%p162) target = $region16
      $region15: #{basic_block_forward.1} parent=11 // pred_region
        _
      $region16: #{basic_block_forward.1} parent=11 // pred_fallthru
        _
      // Predicated region
      $region17: #{basic_block_forward.1} parent=11 // pred_check
        %p165 = pneg %p79
      $region18: #{basic_block_forward.1} parent=11 // pred_check_branch
        %167 = sbr.rel (%p165) target = $region20
      $region19: #{basic_block_forward.1} parent=11 // pred_region
        _
      $region20: #{basic_block_forward.1} parent=11 // pred_fallthru
        _
      // Predicated region
      $region21: #{basic_block_forward.1} parent=11 // pred_check
        %p168 = pneg %p100
      $region22: #{basic_block_forward.1} parent=11 // pred_check_branch
        %170 = sbr.rel (%p168) target = $region24
      $region23: #{basic_block_forward.1} parent=11 // pred_region
        _
      $region24: #{basic_block_forward.1} parent=11 // pred_fallthru
        _
      // Predicated region
      $region25: #{basic_block_forward.1} parent=11 // pred_check
        %p171 = pneg %p121
      $region26: #{basic_block_forward.1} parent=11 // pred_check_branch
        %173 = sbr.rel (%p171) target = $region28
      $region27: #{basic_block_forward.1} parent=11 // pred_region
        _
      $region28: #{basic_block_forward.1} parent=11 // pred_fallthru
        _
    $region12: #{basic_block_forward.1} parent=5 // pred_fallthru
      _
    %p174 = scmp.lt.s32.totalorder %s11, 2
    // Predicated region
    $region29: #{basic_block_forward.1} parent=5 // pred_check
      %p175 = pneg %p174
    $region30: #{basic_block_forward.1} parent=5 // pred_check_branch
      %177 = sbr.rel (%p175) target = $region32
    $region31: #{basic_block_forward.1} parent=5 // pred_region
      // Predicated region
      $region33: #{basic_block_forward.1} parent=31 // pred_check
        %p178 = pneg %p31
      $region34: #{basic_block_forward.1} parent=31 // pred_check_branch
        %180 = sbr.rel (%p178) target = $region36
      $region35: #{basic_block_forward.1} parent=31 // pred_region
        %p181 = scmp.lt.s32.totalorder %s11, 1
        %s182 = scalar_select %p181, %s11, 1
        %s183 = smul.addr %s182, 2
        %s184 = smul.addr %s183, 8
        %s185 = scalar_lea.vmem %s0, %s184
      $region36: #{basic_block_forward.1} parent=31 // pred_fallthru
        _
    $region32: #{basic_block_forward.1} parent=5 // pred_fallthru
      _
    %p186 = scmp.le.s32.totalorder 1, %s11
    %p187 = scmp.lt.s32.totalorder %s11, 3
    %p188 = pnand %p186, %p187
    %p189 = pneg %p188
    // Predicated region
    $region37: #{basic_block_forward.1} parent=5 // pred_check
      _
    $region38: #{basic_block_forward.1} parent=5 // pred_check_branch
      %191 = sbr.rel (%p188) target = $region40
    $region39: #{basic_block_forward.1} parent=5 // pred_region
      %s192 = ssub.s32 %s11, 1
      %p193 = scmp.lt.s32.totalorder %s16, 1
      %s194 = scalar_select %p193, %s16, 1
      %s195 = smul.addr %s194, 2
      %s196 = smul.addr %s195, 8
      %s197 = scalar_lea.vmem %s0, %s196
      %p198 = pneg %p37
      %p199 = pneg %p34
      %p200 = pneg %p58
      %p201 = pneg %p55
      %p202 = pneg %p79
      %p203 = pneg %p76
      %p204 = pneg %p100
      %p205 = pneg %p97
      %p206 = pneg %p121
      %p207 = pneg %p118
      %p208 = pneg %p147
      %p209 = pneg %p144
      %p210 = scmp.lt.s32.totalorder %s16, 1
      %s211 = scalar_select %p210, %s16, 1
      %s212 = smul.addr %s211, 2
      %s213 = smul.addr %s212, 8
      %s214 = scalar_lea.vmem %s5, %s213
      %p215 = scmp.lt.s32.totalorder %s16, 1
      %s216 = scalar_select %p215, %s16, 1
      %s217 = smul.addr %s216, 2
      %s218 = smul.addr %s217, 8
      %s219 = scalar_lea.vmem %s0, %s218
      %p220 = scmp.lt.s32.totalorder %s16, 1
      %s221 = scalar_select %p220, %s16, 1
      %s222 = smul.addr %s221, 2
      %s223 = smul.addr %s222, 8
      %s224 = scalar_lea.vmem %s5, %s223
      %vm225 = vcmask 516096
      %226 = vst.msk [vmem:[#allocation2] sm:$0x1] %vm225, 0.0
      %227 = vst.msk [vmem:[#allocation2 + $0x11] sm:$0x1] %vm225, 0.0
      %v228 = vld [vmem:[%s219] sm:$0xff]
      %v229 = vld [vmem:[%s219 + $0x8] sm:$0xff]
      %vm230 = vcmask 523264
      %231 = vst.msk [vmem:[#allocation2 + $0x1] sm:$0xff] %vm230, %v228
      %232 = vst.msk [vmem:[#allocation2 + $0x9] sm:$0xff] %vm230, %v229
      %v233 = vld [vmem:[#allocation2] sm:$0xff]
      %v234 = vld [vmem:[#allocation2 + $0x8] sm:$0xff]
      %v235 = vld [vmem:[%s1] sm:$0xff]
      %v236 = vld [vmem:[%s1 + $0x8] sm:$0xff]
      %v237 = vld [vmem:[%s1 + $0x10] sm:$0xff]
      %v238 = vld [vmem:[%s1 + $0x18] sm:$0xff]
      %v239 = vld [vmem:[%s1 + $0x20] sm:$0xff]
      %v240 = vld [vmem:[%s1 + $0x28] sm:$0xff]
      %v241 = vld [vmem:[%s1 + $0x30] sm:$0xff]
      %v242 = vld [vmem:[%s1 + $0x38] sm:$0xff]
      %v243 = vld [vmem:[#allocation2 + $0x1] sm:$0xff]
      %v244 = vld [vmem:[#allocation2 + $0x9] sm:$0xff]
      %s245 = scalar_lea.vmem %s1, 64
      %v246 = vld [vmem:[%s245] sm:$0xff]
      %v247 = vld [vmem:[%s245 + $0x8] sm:$0xff]
      %v248 = vld [vmem:[%s245 + $0x10] sm:$0xff]
      %v249 = vld [vmem:[%s245 + $0x18] sm:$0xff]
      %v250 = vld [vmem:[%s245 + $0x20] sm:$0xff]
      %v251 = vld [vmem:[%s245 + $0x28] sm:$0xff]
      %v252 = vld [vmem:[%s245 + $0x30] sm:$0xff]
      %v253 = vld [vmem:[%s245 + $0x38] sm:$0xff]
      %v255 = vsel %vm230, %v243, 0
      %v258 = vsel %vm230, %v244, 0
      %260 = vmatpush.msra.mxu0 0.0
      %261 = vmatpush.msra.mxu0 0.0
      %262 = vmatpush.msra.mxu0 0.0
      %263 = vmatpush.msra.mxu0 0.0
      %264 = vmatpush.msra.mxu0 0.0
      %265 = vmatpush.msra.mxu0 0.0
      %266 = vmatpush.msra.mxu0 0.0
      %267 = vmatpush.msra.mxu0 0.0
      %268 = vmatpush.msra.mxu0 %v253
      %269 = vmatpush.msra.mxu0 %v252
      %270 = vmatpush.msra.mxu0 %v251
      %271 = vmatpush.msra.mxu0 %v250
      %272 = vmatpush.msra.mxu0 %v249
      %273 = vmatpush.msra.mxu0 %v248
      %274 = vmatpush.msra.mxu0 %v247
      %275 = vmatpush.msra.mxu0 %v246
      %276 = vmatmul.f32.gmra.mxu0 %v255
      %v277 = vpop.f32.mrf.mxu0
      %v278 = vadd.f32 0.0, %v277
      %279 = vmatmul.f32.gmra.mxu0 %v258
      %v280 = vpop.f32.mrf.mxu0
      %v281 = vadd.f32 0.0, %v280
      %282 = vdwg.mxu0
      %v284 = vsel %vm230, %v233, 0
      %v287 = vsel %vm230, %v234, 0
      %289 = vmatpush.msra.mxu0 0.0
      %290 = vmatpush.msra.mxu0 0.0
      %291 = vmatpush.msra.mxu0 0.0
      %292 = vmatpush.msra.mxu0 0.0
      %293 = vmatpush.msra.mxu0 0.0
      %294 = vmatpush.msra.mxu0 0.0
      %295 = vmatpush.msra.mxu0 0.0
      %296 = vmatpush.msra.mxu0 0.0
      %297 = vmatpush.msra.mxu0 %v242
      %298 = vmatpush.msra.mxu0 %v241
      %299 = vmatpush.msra.mxu0 %v240
      %300 = vmatpush.msra.mxu0 %v239
      %301 = vmatpush.msra.mxu0 %v238
      %302 = vmatpush.msra.mxu0 %v237
      %303 = vmatpush.msra.mxu0 %v236
      %304 = vmatpush.msra.mxu0 %v235
      %305 = vmatmul.f32.gmra.mxu0 %v284
      %v306 = vpop.f32.mrf.mxu0
      %v307 = vadd.f32 %v278, %v306
      %308 = vmatmul.f32.gmra.mxu0 %v287
      %v309 = vpop.f32.mrf.mxu0
      %v310 = vadd.f32 %v281, %v309
      %311 = vdwg.mxu0
      %v312 = vld [vmem:[#allocation2 + $0x2] sm:$0xff]
      %v313 = vld [vmem:[#allocation2 + $0xa] sm:$0xff]
      %s314 = scalar_lea.vmem %s1, 128
      %v315 = vld [vmem:[%s314] sm:$0xff]
      %v316 = vld [vmem:[%s314 + $0x8] sm:$0xff]
      %v317 = vld [vmem:[%s314 + $0x10] sm:$0xff]
      %v318 = vld [vmem:[%s314 + $0x18] sm:$0xff]
      %v319 = vld [vmem:[%s314 + $0x20] sm:$0xff]
      %v320 = vld [vmem:[%s314 + $0x28] sm:$0xff]
      %v321 = vld [vmem:[%s314 + $0x30] sm:$0xff]
      %v322 = vld [vmem:[%s314 + $0x38] sm:$0xff]
      %v324 = vsel %vm230, %v312, 0
      %v327 = vsel %vm230, %v313, 0
      %329 = vmatpush.msra.mxu0 0.0
      %330 = vmatpush.msra.mxu0 0.0
      %331 = vmatpush.msra.mxu0 0.0
      %332 = vmatpush.msra.mxu0 0.0
      %333 = vmatpush.msra.mxu0 0.0
      %334 = vmatpush.msra.mxu0 0.0
      %335 = vmatpush.msra.mxu0 0.0
      %336 = vmatpush.msra.mxu0 0.0
      %337 = vmatpush.msra.mxu0 %v322
      %338 = vmatpush.msra.mxu0 %v321
      %339 = vmatpush.msra.mxu0 %v320
      %340 = vmatpush.msra.mxu0 %v319
      %341 = vmatpush.msra.mxu0 %v318
      %342 = vmatpush.msra.mxu0 %v317
      %343 = vmatpush.msra.mxu0 %v316
      %344 = vmatpush.msra.mxu0 %v315
      %345 = vmatmul.f32.gmra.mxu0 %v324
      %v346 = vpop.f32.mrf.mxu0
      %v347 = vadd.f32 0.0, %v346
      %348 = vmatmul.f32.gmra.mxu0 %v327
      %v349 = vpop.f32.mrf.mxu0
      %v350 = vadd.f32 0.0, %v349
      %351 = vdwg.mxu0
      %v352 = vadd.f32 %v307, %v347
      %v353 = vadd.f32 %v310, %v350
      %v354 = vld [vmem:[%s3] sm:$0x1]
      %v356 = vperm.slane %v354, 0
      %v358 = vadd.f32 %v352, %v356
      %v359 = vadd.f32 %v353, %v356
      %v360 = vmax.f32 %v358, 0.0
      %v361 = vmax.f32 %v359, 0.0
      %362 = vst.msk [vmem:[#allocation3] sm:$0x1] %vm225, 0.0
      %363 = vst.msk [vmem:[#allocation3 + $0x11] sm:$0x1] %vm225, 0.0
      %364 = vst.msk [vmem:[#allocation3 + $0x1] sm:$0xff] %vm230, %v360
      %365 = vst.msk [vmem:[#allocation3 + $0x9] sm:$0xff] %vm230, %v361
      %v366 = vld [vmem:[#allocation3] sm:$0xff]
      %v367 = vld [vmem:[#allocation3 + $0x8] sm:$0xff]
      %v368 = vld [vmem:[%s2] sm:$0xff]
      %v369 = vld [vmem:[%s2 + $0x8] sm:$0xff]
      %v370 = vld [vmem:[%s2 + $0x10] sm:$0xff]
      %v371 = vld [vmem:[%s2 + $0x18] sm:$0xff]
      %v372 = vld [vmem:[%s2 + $0x20] sm:$0xff]
      %v373 = vld [vmem:[%s2 + $0x28] sm:$0xff]
      %v374 = vld [vmem:[%s2 + $0x30] sm:$0xff]
      %v375 = vld [vmem:[%s2 + $0x38] sm:$0xff]
      %v376 = vld [vmem:[#allocation3 + $0x1] sm:$0xff]
      %v377 = vld [vmem:[#allocation3 + $0x9] sm:$0xff]
      %s378 = scalar_lea.vmem %s2, 64
      %v379 = vld [vmem:[%s378] sm:$0xff]
      %v380 = vld [vmem:[%s378 + $0x8] sm:$0xff]
      %v381 = vld [vmem:[%s378 + $0x10] sm:$0xff]
      %v382 = vld [vmem:[%s378 + $0x18] sm:$0xff]
      %v383 = vld [vmem:[%s378 + $0x20] sm:$0xff]
      %v384 = vld [vmem:[%s378 + $0x28] sm:$0xff]
      %v385 = vld [vmem:[%s378 + $0x30] sm:$0xff]
      %v386 = vld [vmem:[%s378 + $0x38] sm:$0xff]
      %v388 = vsel %vm230, %v376, 0
      %v391 = vsel %vm230, %v377, 0
      %393 = vmatpush.msra.mxu0 0.0
      %394 = vmatpush.msra.mxu0 0.0
      %395 = vmatpush.msra.mxu0 0.0
      %396 = vmatpush.msra.mxu0 0.0
      %397 = vmatpush.msra.mxu0 0.0
      %398 = vmatpush.msra.mxu0 0.0
      %399 = vmatpush.msra.mxu0 0.0
      %400 = vmatpush.msra.mxu0 0.0
      %401 = vmatpush.msra.mxu0 %v386
      %402 = vmatpush.msra.mxu0 %v385
      %403 = vmatpush.msra.mxu0 %v384
      %404 = vmatpush.msra.mxu0 %v383
      %405 = vmatpush.msra.mxu0 %v382
      %406 = vmatpush.msra.mxu0 %v381
      %407 = vmatpush.msra.mxu0 %v380
      %408 = vmatpush.msra.mxu0 %v379
      %409 = vmatmul.f32.gmra.mxu0 %v388
      %v410 = vpop.f32.mrf.mxu0
      %v411 = vadd.f32 0.0, %v410
      %412 = vmatmul.f32.gmra.mxu0 %v391
      %v413 = vpop.f32.mrf.mxu0
      %v414 = vadd.f32 0.0, %v413
      %415 = vdwg.mxu0
      %v417 = vsel %vm230, %v366, 0
      %v420 = vsel %vm230, %v367, 0
      %422 = vmatpush.msra.mxu0 0.0
      %423 = vmatpush.msra.mxu0 0.0
      %424 = vmatpush.msra.mxu0 0.0
      %425 = vmatpush.msra.mxu0 0.0
      %426 = vmatpush.msra.mxu0 0.0
      %427 = vmatpush.msra.mxu0 0.0
      %428 = vmatpush.msra.mxu0 0.0
      %429 = vmatpush.msra.mxu0 0.0
      %430 = vmatpush.msra.mxu0 %v375
      %431 = vmatpush.msra.mxu0 %v374
      %432 = vmatpush.msra.mxu0 %v373
      %433 = vmatpush.msra.mxu0 %v372
      %434 = vmatpush.msra.mxu0 %v371
      %435 = vmatpush.msra.mxu0 %v370
      %436 = vmatpush.msra.mxu0 %v369
      %437 = vmatpush.msra.mxu0 %v368
      %438 = vmatmul.f32.gmra.mxu0 %v417
      %v439 = vpop.f32.mrf.mxu0
      %v440 = vadd.f32 %v411, %v439
      %441 = vmatmul.f32.gmra.mxu0 %v420
      %v442 = vpop.f32.mrf.mxu0
      %v443 = vadd.f32 %v414, %v442
      %444 = vdwg.mxu0
      %v445 = vld [vmem:[#allocation3 + $0x2] sm:$0xff]
      %v446 = vld [vmem:[#allocation3 + $0xa] sm:$0xff]
      %s447 = scalar_lea.vmem %s2, 128
      %v448 = vld [vmem:[%s447] sm:$0xff]
      %v449 = vld [vmem:[%s447 + $0x8] sm:$0xff]
      %v450 = vld [vmem:[%s447 + $0x10] sm:$0xff]
      %v451 = vld [vmem:[%s447 + $0x18] sm:$0xff]
      %v452 = vld [vmem:[%s447 + $0x20] sm:$0xff]
      %v453 = vld [vmem:[%s447 + $0x28] sm:$0xff]
      %v454 = vld [vmem:[%s447 + $0x30] sm:$0xff]
      %v455 = vld [vmem:[%s447 + $0x38] sm:$0xff]
      %v457 = vsel %vm230, %v445, 0
      %v460 = vsel %vm230, %v446, 0
      %462 = vmatpush.msra.mxu0 0.0
      %463 = vmatpush.msra.mxu0 0.0
      %464 = vmatpush.msra.mxu0 0.0
      %465 = vmatpush.msra.mxu0 0.0
      %466 = vmatpush.msra.mxu0 0.0
      %467 = vmatpush.msra.mxu0 0.0
      %468 = vmatpush.msra.mxu0 0.0
      %469 = vmatpush.msra.mxu0 0.0
      %470 = vmatpush.msra.mxu0 %v455
      %471 = vmatpush.msra.mxu0 %v454
      %472 = vmatpush.msra.mxu0 %v453
      %473 = vmatpush.msra.mxu0 %v452
      %474 = vmatpush.msra.mxu0 %v451
      %475 = vmatpush.msra.mxu0 %v450
      %476 = vmatpush.msra.mxu0 %v449
      %477 = vmatpush.msra.mxu0 %v448
      %478 = vmatmul.f32.gmra.mxu0 %v457
      %v479 = vpop.f32.mrf.mxu0
      %v480 = vadd.f32 0.0, %v479
      %481 = vmatmul.f32.gmra.mxu0 %v460
      %v482 = vpop.f32.mrf.mxu0
      %v483 = vadd.f32 0.0, %v482
      %484 = vdwg.mxu0
      %v485 = vadd.f32 %v440, %v480
      %v486 = vadd.f32 %v443, %v483
      %v487 = vld [vmem:[%s4] sm:$0x1]
      %v489 = vperm.slane %v487, 0
      %v491 = vadd.f32 %v485, %v489
      %v492 = vadd.f32 %v486, %v489
      %v493 = vld [vmem:[#allocation2 + $0x1] sm:$0xff]
      %v494 = vld [vmem:[#allocation2 + $0x9] sm:$0xff]
      %v495 = vadd.f32 %v493, %v491
      %v496 = vadd.f32 %v494, %v492
      %v497 = vmax.f32 %v495, 0.0
      %v498 = vmax.f32 %v496, 0.0
      %499 = vst.msk [vmem:[%s224] sm:$0xff] %vm230, %v497
      %500 = vst.msk [vmem:[%s224 + $0x8] sm:$0xff] %vm230, %v498
      %p501 = scmp.lt.s32.totalorder %s16, 1
      %s502 = scalar_select %p501, %s16, 1
      %s503 = smul.addr %s502, 2
      %s504 = smul.addr %s503, 8
      %s505 = scalar_lea.vmem %s5, %s504
      // Predicated region
      $region41: #{basic_block_forward.1} parent=39 // pred_check
        %p506 = pneg %p144
      $region42: #{basic_block_forward.1} parent=39 // pred_check_branch
        %508 = sbr.rel (%p506) target = $region44
      $region43: #{basic_block_forward.1} parent=39 // pred_region
        _
      $region44: #{basic_block_forward.1} parent=39 // pred_fallthru
        _
    $region40: #{basic_block_forward.1} parent=5 // pred_fallthru
      _
    %p509 = scmp.le.s32.totalorder 2, %s11
    // Predicated region
    $region45: #{basic_block_forward.1} parent=5 // pred_check
      %p510 = pneg %p509
    $region46: #{basic_block_forward.1} parent=5 // pred_check_branch
      %512 = sbr.rel (%p510) target = $region48
    $region47: #{basic_block_forward.1} parent=5 // pred_region
      %s513 = ssub.s32 %s11, 2
      // Predicated region
      $region49: #{basic_block_forward.1} parent=47 // pred_check
        %p514 = pneg %p150
      $region50: #{basic_block_forward.1} parent=47 // pred_check_branch
        %516 = sbr.rel (%p514) target = $region52
      $region51: #{basic_block_forward.1} parent=47 // pred_region
        %p517 = scmp.lt.s32.totalorder %s17, 1
        %s518 = scalar_select %p517, %s17, 1
        %s519 = smul.addr %s518, 2
        %s520 = smul.addr %s519, 8
        %s521 = scalar_lea.vmem %s5, %s520
      $region52: #{basic_block_forward.1} parent=47 // pred_fallthru
        _
    $region48: #{basic_block_forward.1} parent=5 // pred_fallthru
      _
  $region6: #{basic_block_forward.1} parent=0 // loop_footer
    %s15 = sadd.s32 1, %s11
  $region7: #{basic_block_forward.1} parent=0 // loop_footer_branch
    %10 = sbr.rel target = $region3
  $region8: #{basic_block_forward.1} parent=0 // loop_exit
    _

</llo_original>
